<compile_context>
chip_gen: v5e
topology: v5e:2x2
jax: 0.10.0
libtpu: 0.0.40
codegen_flags: <defaults>
</compile_context>

<pallas_src>
import jax
import jax.numpy as jnp
from jax.experimental import pallas as pl
from jax.experimental.pallas import tpu as pltpu


def _mlm_kernel(x_ref, w_ref, b_ref, o_ref):
    # x_ref: (tm, H)   w_ref: (H, tn)   b_ref: (1, tn)   o_ref: (tm, tn)
    acc = jnp.dot(x_ref[...], w_ref[...], preferred_element_type=jnp.float32)
    acc = acc + b_ref[...].astype(jnp.float32)
    o_ref[...] = acc.astype(o_ref.dtype)


def _vmem_capacity_bytes():
    try:
        info = pltpu.get_tpu_info()
        cap = getattr(info, "vmem_capacity_bytes", None)
        if cap:
            return int(cap)
    except Exception:
        pass
    return 64 * 1024 * 1024  # conservative fallback: v7x per-TC VMEM


def _round_down(x, m):
    return (x // m) * m


def _choose_tiles(M, hidden, vocab, c_item, o_item, budget):
    """Pick (tm, tn) so double-buffered tiles fit in `budget` bytes.

    Grow tm toward M (minimizes weight re-streaming from HBM); shrink tn
    (not tm) when VMEM is tight.  tn stays a multiple of 128.
    """
    tn = vocab if vocab <= 512 else 512
    while True:
        fixed = 2 * tn * hidden * c_item + 2 * tn * 4          # weight + f32 bias (dbuf)
        per_row = 2 * hidden * c_item + 2 * tn * o_item        # x + output (dbuf) per row
        avail = budget - fixed
        tm_max = avail // per_row if avail > 0 else 0
        if tm_max >= M:
            return M, tn                       # weight streams exactly once
        if tm_max >= 128:
            return _round_down(tm_max, 128), tn
        if tm_max >= 16:                       # bf16 packs 2 rows/sublane -> %16
            return _round_down(tm_max, 16), tn
        if tn > 128 and vocab > 128:
            tn = max(128, _round_down(tn // 2, 128))   # trade tn for tm
        else:
            return min(M, 16), tn              # last resort (tiny budgets)


def _ensure_megacore_split(M, vocab, tm, tn):
    """Guarantee >=2 tiles along one parallel axis (v7x has 2 TensorCores)."""
    if pl.cdiv(M, tm) >= 2 or pl.cdiv(vocab, tn) >= 2:
        return tm, tn
    if vocab > 128:
        tn = max(128, _round_down(pl.cdiv(vocab, 2), 128))
        return tm, tn
    if M > 16:
        tm = max(8, _round_down(pl.cdiv(M, 2), 8))
        return tm, tn
    return tm, tn


def mlm_forward(x, weight, bias, *, compute_dtype=jnp.bfloat16, out_dtype=None,
                tile_m=None, tile_n=None):
    """MLM head: x @ weight.T + bias  (PyTorch nn.Linear forward).

    x:      [batch, seq, hidden]
    weight: [vocab, hidden]   (PyTorch nn.Linear layout)
    bias:   [vocab]
    compute_dtype: dtype fed to the MXU (default bf16; accumulation is f32).
    out_dtype: logits dtype (default x.dtype; pass jnp.bfloat16 to halve the
               logits HBM write).
    tile_m / tile_n: optional manual overrides; auto-derived from VMEM otherwise.
    """
    batch, seq, hidden = x.shape
    vocab = weight.shape[0]
    M = batch * seq
    if out_dtype is None:
        out_dtype = x.dtype

    c_dtype = jnp.dtype(compute_dtype) if compute_dtype is not None else jnp.dtype(x.dtype)
    x2d = x.reshape(M, hidden).astype(c_dtype)
    # One-time transpose to [hidden, vocab]: in-kernel matmul is plain NN.
    w_t = weight.astype(c_dtype).T
    b2d = bias.astype(jnp.float32).reshape(1, vocab)

    c_item = c_dtype.itemsize
    o_item = jnp.dtype(out_dtype).itemsize

    cap = _vmem_capacity_bytes()
    budget = int(0.70 * cap)  # leave headroom for compiler scratch

    if tile_m is None or tile_n is None:
        tm, tn = _choose_tiles(M, hidden, vocab, c_item, o_item, budget)
        tm, tn = _ensure_megacore_split(M, vocab, tm, tn)
    else:
        tm, tn = min(tile_m, M), min(tile_n, vocab)

    if tm < M:
        assert tm % 8 == 0, "tile_m must be a multiple of 8 when tiling M"
    if tn < vocab:
        assert tn % 128 == 0, "tile_n must be a multiple of 128 when tiling vocab"

    grid = (pl.cdiv(M, tm), pl.cdiv(vocab, tn))  # M outer, vocab inner

    # Double-buffered tile budget with per-array itemsizes (output uses out_dtype).
    tile_bytes = (2 * tm * hidden * c_item        # x block (resident across j)
                  + 2 * hidden * tn * c_item      # weight block (streams)
                  + 2 * tn * 4                    # f32 bias block
                  + 2 * tm * tn * o_item)         # output block
    vmem_limit = int(min(int(0.80 * cap),
                         max(32 * 1024 * 1024, tile_bytes + (8 << 20))))

    cost = pl.CostEstimate(
        flops=2 * M * hidden * vocab,
        bytes_accessed=(M * hidden * c_item + vocab * hidden * c_item
                        + vocab * 4 + M * vocab * o_item),
        transcendentals=0,
    )

    out2d = pl.pallas_call(
        _mlm_kernel,
        out_shape=jax.ShapeDtypeStruct((M, vocab), out_dtype),
        grid_spec=pltpu.PrefetchScalarGridSpec(
            num_scalar_prefetch=0,
            grid=grid,
            in_specs=[
                # x tile: constant across inner vocab axis -> stays resident in VMEM
                pl.BlockSpec((tm, hidden), lambda i, j: (i, 0)),
                # weight tile [hidden, tn]: streams over the vocab axis
                pl.BlockSpec((hidden, tn), lambda i, j: (0, j)),
                # bias tile
                pl.BlockSpec((1, tn), lambda i, j: (0, j)),
            ],
            out_specs=pl.BlockSpec((tm, tn), lambda i, j: (i, j)),
        ),
        compiler_params=pltpu.CompilerParams(
            dimension_semantics=("parallel", "parallel"),
            vmem_limit_bytes=vmem_limit,
        ),
        cost_estimate=cost,
    )(x2d, w_t, b2d)

    return out2d.reshape(batch, seq, vocab)


if __name__ == "__main__":
    batch, seq, hidden, vocab = 2, 8, 32, 384

    key = jax.random.PRNGKey(0)
    kx, kw, kb = jax.random.split(key, 3)

    x = jax.random.normal(kx, (batch, seq, hidden), dtype=jnp.float32)
    # PyTorch Linear parameter shapes: W [vocab, hidden], b [vocab]
    weight = jax.random.normal(kw, (vocab, hidden), dtype=jnp.float32) * 0.02
    bias = jax.random.normal(kb, (vocab,), dtype=jnp.float32) * 0.02

    out = mlm_forward(x, weight, bias)   # default bf16 compute, f32 output
    out = jax.block_until_ready(out)

    # Reference check against plain f32 JAX (bf16 MXU inputs -> loose tolerance).
    ref = x @ weight.T + bias
    assert out.shape == (batch, seq, vocab)
    assert out.dtype == x.dtype
    assert jnp.allclose(out, ref, atol=1e-2, rtol=1e-2), float(jnp.max(jnp.abs(out - ref)))

    print("KERNEL_OK")
</pallas_src>

<mosaic_0001>
module attributes {stable_mosaic.version = 11 : i64} {
  func.func @_mlm_kernel(%arg0: i32, %arg1: i32, %arg2: memref<16x32xbf16, #tpu.memory_space<vmem>>, %arg3: memref<32x128xbf16, #tpu.memory_space<vmem>>, %arg4: memref<1x128xf32, #tpu.memory_space<vmem>>, %arg5: memref<16x128xf32, #tpu.memory_space<vmem>>) attributes {dimension_semantics = [#tpu.dimension_semantics<parallel>, #tpu.dimension_semantics<parallel>], iteration_bounds = array<i64: 1, 3>, scalar_prefetch = 0 : i64, scratch_operands = 0 : i64, tpu.core_type = #tpu.core_type<tc>, window_params = [{transform_indices = @transform_0, window_bounds = array<i64: 16, 32>}, {transform_indices = @transform_1, window_bounds = array<i64: 32, 128>}, {transform_indices = @transform_2, window_bounds = array<i64: 1, 128>}, {transform_indices = @transform_3, window_bounds = array<i64: 16, 128>}]} {
    %c0 = arith.constant 0 : index
    %c0_0 = arith.constant 0 : index
    %0 = vector.load %arg2[%c0, %c0_0] : memref<16x32xbf16, #tpu.memory_space<vmem>>, vector<16x32xbf16>
    %c0_1 = arith.constant 0 : index
    %c0_2 = arith.constant 0 : index
    %1 = vector.load %arg3[%c0_1, %c0_2] : memref<32x128xbf16, #tpu.memory_space<vmem>>, vector<32x128xbf16>
    %cst = arith.constant dense<0.000000e+00> : vector<16x128xf32>
    %2 = tpu.matmul %0, %1, %cst {dimension_numbers = #tpu.dot_dimension_numbers<[1], [0], [0], [1], [0, 0, 1, 1], [], []>} : vector<16x32xbf16>, vector<32x128xbf16>, vector<16x128xf32> -> vector<16x128xf32>
    %c0_3 = arith.constant 0 : index
    %c0_4 = arith.constant 0 : index
    %3 = vector.load %arg4[%c0_3, %c0_4] : memref<1x128xf32, #tpu.memory_space<vmem>>, vector<1x128xf32>
    %4 = vector.broadcast %3 : vector<1x128xf32> to vector<16x128xf32>
    %5 = arith.addf %2, %4 : vector<16x128xf32>
    %c0_5 = arith.constant 0 : index
    %c0_6 = arith.constant 0 : index
    %6 = vector.load %arg5[%c0_5, %c0_6] : memref<16x128xf32, #tpu.memory_space<vmem>>, vector<16x128xf32>
    tpu.vector_store %arg5[%c0_5, %c0_6], %5 {strides = array<i32>} : memref<16x128xf32, #tpu.memory_space<vmem>>, vector<16x128xf32>,
    return
  }
  func.func @transform_0(%arg0: i32, %arg1: i32) -> (i32, i32) {
    %c0_i32 = arith.constant 0 : i32
    %c0_i32_0 = arith.constant 0 : i32
    return %arg0, %c0_i32 : i32, i32
  }
  func.func @transform_1(%arg0: i32, %arg1: i32) -> (i32, i32) {
    %c0_i32 = arith.constant 0 : i32
    %c0_i32_0 = arith.constant 0 : i32
    return %c0_i32, %arg1 : i32, i32
  }
  func.func @transform_2(%arg0: i32, %arg1: i32) -> (i32, i32) {
    %c0_i32 = arith.constant 0 : i32
    %c0_i32_0 = arith.constant 0 : i32
    return %c0_i32, %arg1 : i32, i32
  }
  func.func @transform_3(%arg0: i32, %arg1: i32) -> (i32, i32) {
    %c0_i32 = arith.constant 0 : i32
    return %arg0, %arg1 : i32, i32
  }
}

</mosaic_0001>

<llo_original>
// kernel: tpu_custom_call.1
$region0: #{tpu_custom_call.1}
  #allocation0 [shape = 'u32[]', space=smem, size = 0x4, offset = 0x4, fixed_abs, tag = 'smem constant byte address 0x4 - core index']
  #allocation1 [shape = 'u32[72,128]{1,0:T(1,128)}', space=vmem, size = 0x9000, scoped, tag = 'internal scratch']
  %s0 = inlined_call_operand.hbm [shape: bf16[16,32], index: 0, kind: input, shape index: {}]
  %s1 = inlined_call_operand.hbm [shape: bf16[32,384], index: 1, kind: input, shape index: {}]
  %s2 = inlined_call_operand.hbm [shape: f32[1,384], index: 2, kind: input, shape index: {}]
  %s3 = inlined_call_operand.hbm [shape: f32[16,384], index: 3, kind: output, shape index: {}]
  %s4 = sld [smem:[#allocation0]]
  $region57: #{tpu_custom_call.1} parent=0
    _
  %s6 = ssub.s32 1, %s4
  %s7 = scalar_select 0, %s6, %s4
  $region1: #{tpu_custom_call.1} parent=0
    #allocation2 [shape = 'u8[4096]{0}', space=vmem, size = 0x1000, scoped, tag = 'input window, operand 0, single buffered']
    #allocation3 [shape = 's32[2]{0}', space=sflag, size = 0x8, scoped, tag = 'scoped memory for tpu_custom_call.1']
    #allocation4 [shape = 's32[2]{0}', space=sflag, size = 0x8, scoped, tag = 'scoped memory for tpu_custom_call.1']
    #allocation5 [shape = 'u8[16384]{0}', space=vmem, size = 0x4000, scoped, tag = 'input window, operand 1']
    #allocation6 [shape = 's32[2]{0}', space=sflag, size = 0x8, scoped, tag = 'scoped memory for tpu_custom_call.1']
    #allocation7 [shape = 'u8[1024]{0}', space=vmem, size = 0x400, scoped, tag = 'input window, operand 2']
    #allocation8 [shape = 'u8[16384]{0}', space=vmem, size = 0x4000, scoped, tag = 'output window, operand 0']
    %8 = vsyncpa [#allocation3], 0
    %9 = vsyncpa [#allocation6], 0
    %s10 = scalar_lea.sflag [#allocation6], 1
    %11 = vsyncpa %s10, 0
    %12 = vsyncpa [#allocation4], 0
    %s13 = scalar_lea.sflag [#allocation4], 1
    %14 = vsyncpa %s13, 0
    loop: start=0, step=1, limit=5
    $region2: #{tpu_custom_call.1} parent=1 // loop_pre_header
      _
    $region3: #{tpu_custom_call.1} parent=1 // loop_header
      %s16 = sphi 0, %s20
      %p17 = scmp.ge.s32.totalorder %s16, 5
      %s23 = sphi 0, %s35
      %s24 = sphi 0, %s31
      %s25 = sphi 0, %s23
      %s26 = sphi 0, %s24
      %s27 = sphi 0, %s25
      %s28 = sphi 0, %s26
      %s38 = sphi 0, %s40
      %s41 = sphi 0, %s38
      %s42 = sphi 0, %s41
      %s58 = sphi 0, %s42
      %s64 = sphi 0, %s66
      %s67 = sphi 0, %s64
      %s68 = sphi 0, %s67
      %s84 = sphi 0, %s68
      %s90 = sphi 0, %s92
      %s93 = sphi 0, %s90
      %s94 = sphi 0, %s93
      %s110 = sphi 0, %s94
      %s118 = sphi 0, %s120
      %s121 = sphi 0, %s118
      %s122 = sphi 0, %s121
      %s138 = sphi 0, %s122
    $region4: #{tpu_custom_call.1} parent=1 // loop_header_branch
      %19 = sbr.rel (%p17) target = $region8
    $region5: #{tpu_custom_call.1} parent=1 // loop_body
      %s21 = ssub.s32 %s16, 1
      %s22 = ssub.s32 %s16, 2
      %s29 = sadd.s32 1, %s24
      %p30 = scmp.ge.s32.totalorder %s29, 3
      %s31 = scalar_select %p30, 0, %s29
      %s32 = sadd.s32 1, %s23
      %s33 = scalar_select %p30, %s32, %s23
      %p34 = scmp.ge.s32.totalorder %s33, 1
      %s35 = scalar_select %p34, 0, %s33
      %s36 = ssub.s32 %s23, %s35
      %p37 = scmp.eq.s32.totalorder %s36, 0
      %s39 = sadd.s32 %s38, 1
      %s40 = scalar_select %p37, %s38, %s39
      %p43 = pneg %p37
      %p44 = scmp.eq.s32.totalorder %s16, 2
      %p45 = por %p43, %p44
      %p46 = scmp.ne.s32.totalorder %s38, %s41
      %p47 = scmp.eq.s32.totalorder %s16, 0
      %p48 = por %p46, %p47
      %p49 = scmp.ne.s32.totalorder %s38, %s41
      %p50 = scmp.eq.s32.totalorder %s21, 2
      %p51 = por %p49, %p50
      %p52 = scmp.ne.s32.totalorder %s41, %s42
      %p53 = scmp.eq.s32.totalorder %s21, 0
      %p54 = por %p52, %p53
      %p55 = scmp.ne.s32.totalorder %s41, %s42
      %p56 = scmp.eq.s32.totalorder %s22, 2
      %p57 = por %p55, %p56
      %p59 = scmp.ne.s32.totalorder %s42, %s58
      %p60 = scmp.eq.s32.totalorder %s22, 0
      %p61 = por %p59, %p60
      %s62 = ssub.s32 %s24, %s31
      %p63 = scmp.eq.s32.totalorder %s62, 0
      %s65 = sadd.s32 %s64, 1
      %s66 = scalar_select %p63, %s64, %s65
      %p69 = pneg %p63
      %p70 = scmp.eq.s32.totalorder %s16, 2
      %p71 = por %p69, %p70
      %p72 = scmp.ne.s32.totalorder %s64, %s67
      %p73 = scmp.eq.s32.totalorder %s16, 0
      %p74 = por %p72, %p73
      %p75 = scmp.ne.s32.totalorder %s64, %s67
      %p76 = scmp.eq.s32.totalorder %s21, 2
      %p77 = por %p75, %p76
      %p78 = scmp.ne.s32.totalorder %s67, %s68
      %p79 = scmp.eq.s32.totalorder %s21, 0
      %p80 = por %p78, %p79
      %p81 = scmp.ne.s32.totalorder %s67, %s68
      %p82 = scmp.eq.s32.totalorder %s22, 2
      %p83 = por %p81, %p82
      %p85 = scmp.ne.s32.totalorder %s68, %s84
      %p86 = scmp.eq.s32.totalorder %s22, 0
      %p87 = por %p85, %p86
      %s88 = ssub.s32 %s24, %s31
      %p89 = scmp.eq.s32.totalorder %s88, 0
      %s91 = sadd.s32 %s90, 1
      %s92 = scalar_select %p89, %s90, %s91
      %p95 = pneg %p89
      %p96 = scmp.eq.s32.totalorder %s16, 2
      %p97 = por %p95, %p96
      %p98 = scmp.ne.s32.totalorder %s90, %s93
      %p99 = scmp.eq.s32.totalorder %s16, 0
      %p100 = por %p98, %p99
      %p101 = scmp.ne.s32.totalorder %s90, %s93
      %p102 = scmp.eq.s32.totalorder %s21, 2
      %p103 = por %p101, %p102
      %p104 = scmp.ne.s32.totalorder %s93, %s94
      %p105 = scmp.eq.s32.totalorder %s21, 0
      %p106 = por %p104, %p105
      %p107 = scmp.ne.s32.totalorder %s93, %s94
      %p108 = scmp.eq.s32.totalorder %s22, 2
      %p109 = por %p107, %p108
      %p111 = scmp.ne.s32.totalorder %s94, %s110
      %p112 = scmp.eq.s32.totalorder %s22, 0
      %p113 = por %p111, %p112
      %s114 = ssub.s32 %s23, %s35
      %s115 = ssub.s32 %s24, %s31
      %s116 = sor.u32 %s114, %s115
      %p117 = scmp.eq.s32.totalorder %s116, 0
      %s119 = sadd.s32 %s118, 1
      %s120 = scalar_select %p117, %s118, %s119
      %p123 = pneg %p117
      %p124 = scmp.eq.s32.totalorder %s16, 2
      %p125 = por %p123, %p124
      %p126 = scmp.ne.s32.totalorder %s118, %s121
      %p127 = scmp.eq.s32.totalorder %s16, 0
      %p128 = por %p126, %p127
      %p129 = scmp.ne.s32.totalorder %s118, %s121
      %p130 = scmp.eq.s32.totalorder %s21, 2
      %p131 = por %p129, %p130
      %p132 = scmp.ne.s32.totalorder %s121, %s122
      %p133 = scmp.eq.s32.totalorder %s21, 0
      %p134 = por %p132, %p133
      %p135 = scmp.ne.s32.totalorder %s121, %s122
      %p136 = scmp.eq.s32.totalorder %s22, 2
      %p137 = por %p135, %p136
      %p139 = scmp.ne.s32.totalorder %s122, %s138
      %p140 = scmp.eq.s32.totalorder %s22, 0
      %p141 = por %p139, %p140
      %p142 = scmp.le.s32.totalorder 1, %s16
      %p143 = scmp.lt.s32.totalorder %s16, 4
      %p144 = pnand %p142, %p143
      %p145 = pneg %p144
      // Predicated region
      $region9: #{tpu_custom_call.1} parent=5 // pred_check
        _
      $region10: #{tpu_custom_call.1} parent=5 // pred_check_branch
        %147 = sbr.rel (%p144) target = $region12
      $region11: #{tpu_custom_call.1} parent=5 // pred_region
        %s148 = ssub.s32 %s16, 1
        // Predicated region
        $region13: #{tpu_custom_call.1} parent=11 // pred_check
          %p149 = pneg %p54
        $region14: #{tpu_custom_call.1} parent=11 // pred_check_branch
          %151 = sbr.rel (%p149) target = $region16
        $region15: #{tpu_custom_call.1} parent=11 // pred_region
          %s152 = smul.u32 2, %s25
          %154 = vsyncadd [#allocation3], 0
          %s155 = smul.addr %s152, 4
          %s156 = scalar_lea.hbm %s0, %s155
          %s157 = sshll.u32 %s156, 4
          %s158 = int_to_ptr.hbm [resolvable:$true] %s157
          %s159 = sshll.u32 [#allocation2], 4
          %s160 = int_to_ptr.vmem [resolvable:$true] %s159
          %165 = dma.hbm_to_vmem [thread:$0]  %s158, 128, %s160, [#allocation3], 64, 64, 4
        $region16: #{tpu_custom_call.1} parent=11 // pred_fallthru
          _
      $region12: #{tpu_custom_call.1} parent=5 // pred_fallthru
        _
      %p166 = scmp.lt.s32.totalorder %s16, 3
      // Predicated region
      $region17: #{tpu_custom_call.1} parent=5 // pred_check
        %p167 = pneg %p166
      $region18: #{tpu_custom_call.1} parent=5 // pred_check_branch
        %169 = sbr.rel (%p167) target = $region20
      $region19: #{tpu_custom_call.1} parent=5 // pred_region
        // Predicated region
        $region21: #{tpu_custom_call.1} parent=19 // pred_check
          %p170 = pneg %p74
        $region22: #{tpu_custom_call.1} parent=19 // pred_check_branch
          %172 = sbr.rel (%p170) target = $region24
        $region23: #{tpu_custom_call.1} parent=19 // pred_region
          %s173 = sand.u32 %s16, 1
          %s174 = scalar_lea.sflag [#allocation6], %s173
          %s175 = sand.u32 %s64, 1
          %s176 = smul.addr %s175, 16
          %s177 = scalar_lea.vmem [#allocation5], %s176
          %179 = vsyncadd %s174, 0
          %s180 = smul.addr %s24, 4
          %s181 = scalar_lea.hbm %s1, %s180
          %s182 = sshll.u32 %s181, 4
          %s183 = int_to_ptr.hbm [resolvable:$true] %s182
          %s184 = sshll.u32 %s177, 4
          %s185 = int_to_ptr.vmem [resolvable:$true] %s184
          %190 = dma.hbm_to_vmem [thread:$0]  %s183, 256, %s185, %s174, 192, 64, 4
        $region24: #{tpu_custom_call.1} parent=19 // pred_fallthru
          _
        // Predicated region
        $region25: #{tpu_custom_call.1} parent=19 // pred_check
          %p191 = pneg %p100
        $region26: #{tpu_custom_call.1} parent=19 // pred_check_branch
          %193 = sbr.rel (%p191) target = $region28
        $region27: #{tpu_custom_call.1} parent=19 // pred_region
          %s194 = sand.u32 %s16, 1
          %s195 = scalar_lea.sflag [#allocation6], %s194
          %s196 = sand.u32 %s90, 1
          %s197 = scalar_lea.vmem [#allocation7], %s196
          %199 = vsyncadd %s195, 0
          %s200 = scalar_lea.hbm %s2, %s24
          %s202 = sshll.u32 %s200, 4
          %s203 = int_to_ptr.hbm [resolvable:$true] %s202
          %s204 = sshll.u32 %s197, 4
          %s205 = int_to_ptr.vmem [resolvable:$true] %s204
          %207 = dma.hbm_to_vmem [thread:$0]  %s203, 16, %s205, %s195
        $region28: #{tpu_custom_call.1} parent=19 // pred_fallthru
          _
      $region20: #{tpu_custom_call.1} parent=5 // pred_fallthru
        _
      %p208 = scmp.le.s32.totalorder 1, %s16
      %p209 = scmp.lt.s32.totalorder %s16, 4
      %p210 = pnand %p208, %p209
      %p211 = pneg %p210
      // Predicated region
      $region29: #{tpu_custom_call.1} parent=5 // pred_check
        _
      $region30: #{tpu_custom_call.1} parent=5 // pred_check_branch
        %213 = sbr.rel (%p210) target = $region32
      $region31: #{tpu_custom_call.1} parent=5 // pred_region
        %s214 = ssub.s32 %s16, 1
        // Predicated region
        $region33: #{tpu_custom_call.1} parent=31 // pred_check
          %p215 = pneg %p54
        $region34: #{tpu_custom_call.1} parent=31 // pred_check_branch
          %217 = sbr.rel (%p215) target = $region36
        $region35: #{tpu_custom_call.1} parent=31 // pred_region
          %219 = dma.done [#allocation3], 128
        $region36: #{tpu_custom_call.1} parent=31 // pred_fallthru
          _
        %s220 = sand.u32 %s21, 1
        %s221 = scalar_lea.sflag [#allocation6], %s220
        %s222 = sand.u32 %s67, 1
        %s223 = smul.addr %s222, 16
        %s224 = scalar_lea.vmem [#allocation5], %s223
        // Predicated region
        $region37: #{tpu_custom_call.1} parent=31 // pred_check
          %p225 = pneg %p80
        $region38: #{tpu_custom_call.1} parent=31 // pred_check_branch
          %227 = sbr.rel (%p225) target = $region40
        $region39: #{tpu_custom_call.1} parent=31 // pred_region
          %229 = dma.done %s221, 256
        $region40: #{tpu_custom_call.1} parent=31 // pred_fallthru
          _
        %s230 = sand.u32 %s21, 1
        %s231 = scalar_lea.sflag [#allocation6], %s230
        %s232 = sand.u32 %s93, 1
        %s233 = scalar_lea.vmem [#allocation7], %s232
        // Predicated region
        $region41: #{tpu_custom_call.1} parent=31 // pred_check
          %p234 = pneg %p106
        $region42: #{tpu_custom_call.1} parent=31 // pred_check_branch
          %236 = sbr.rel (%p234) target = $region44
        $region43: #{tpu_custom_call.1} parent=31 // pred_region
          %238 = dma.done %s231, 16
        $region44: #{tpu_custom_call.1} parent=31 // pred_fallthru
          _
        %p239 = pneg %p54
        %p240 = pneg %p51
        %s241 = sand.u32 %s21, 1
        %s242 = scalar_lea.sflag [#allocation6], %s241
        %s243 = sand.u32 %s67, 1
        %s244 = smul.addr %s243, 16
        %s245 = scalar_lea.vmem [#allocation5], %s244
        %p246 = pneg %p80
        %p247 = pneg %p77
        %s248 = sand.u32 %s21, 1
        %s249 = scalar_lea.sflag [#allocation6], %s248
        %s250 = sand.u32 %s93, 1
        %s251 = scalar_lea.vmem [#allocation7], %s250
        %p252 = pneg %p106
        %p253 = pneg %p103
        %p254 = pneg %p134
        %p255 = pneg %p131
        %s256 = sand.u32 %s121, 1
        %s257 = scalar_lea.sflag [#allocation4], %s256
        %s258 = sand.u32 %s121, 1
        %s259 = smul.addr %s258, 16
        %s260 = scalar_lea.vmem [#allocation8], %s259
        %s261 = smul.u32 2, %s25
        %s262 = smul.u32 2, %s25
        %v264 = vld [vmem:[#allocation2] sm:$0xf]
        %v265 = vld [vmem:[#allocation2 + $0x4] sm:$0xf]
        %v266 = vld [vmem:[%s224] sm:$0xf]
        %v267 = vld [vmem:[%s224 + $0x4] sm:$0xf]
        %v268 = vld [vmem:[%s224 + $0x8] sm:$0xf]
        %v269 = vld [vmem:[%s224 + $0xc] sm:$0xf]
        %v270 = vld [vmem:[%s233] sm:$0x1]
        %v272 = vperm.slane %v270, 0
        %v276 = vunpack.c.l.b16 %v264
        %v277 = vunpack.c.l.b16 %v265
        %v278 = vpack.c.b16 %v277, %v276
        %v283 = vunpack.c.l.b16 %v266
        %v284 = vunpack.c.l.b16 %v267
        %v285 = vunpack.c.l.b16 %v268
        %v286 = vunpack.c.l.b16 %v269
        %v287 = vpack.c.b16 %v284, %v283
        %v288 = vpack.c.b16 %v286, %v285
        %vm291 = vcmask 261120
        %v293 = vsel %vm291, %v278, 0
        %295 = vmatpush.bf16.msra.mxu0 0
        %296 = vmatpush.bf16.msra.mxu0 0
        %297 = vmatpush.bf16.msra.mxu0 0
        %298 = vmatpush.bf16.msra.mxu0 0
        %299 = vmatpush.bf16.msra.mxu0 0
        %300 = vmatpush.bf16.msra.mxu0 0
        %301 = vmatpush.bf16.msra.mxu0 %v288
        %302 = vmatpush.bf16.msra.mxu0 %v287
        %303 = vmatmul.bf16.gmra.mxu0 %v293
        %v304 = vpop.f32.mrf.mxu0
        %v305 = vadd.f32 %v272, %v304
        %v306 = vpop.f32.mrf.mxu0
        %v307 = vadd.f32 %v272, %v306
        %308 = vdwg.mxu0
        %309 = vst [vmem:[%s260] sm:$0xff] %v305
        %310 = vst [vmem:[%s260 + $0x8] sm:$0xff] %v307
        %s311 = sand.u32 %s121, 1
        %s312 = scalar_lea.sflag [#allocation4], %s311
        %s313 = sand.u32 %s121, 1
        %s314 = smul.addr %s313, 16
        %s315 = scalar_lea.vmem [#allocation8], %s314
        // Predicated region
        $region45: #{tpu_custom_call.1} parent=31 // pred_check
          %p316 = pneg %p131
        $region46: #{tpu_custom_call.1} parent=31 // pred_check_branch
          %318 = sbr.rel (%p316) target = $region48
        $region47: #{tpu_custom_call.1} parent=31 // pred_region
          %s319 = smul.u32 2, %s25
          %321 = vsyncadd %s312, 0
          %s322 = smul.addr %s319, 3
          %s323 = sadd.s32 %s26, %s322
          %s324 = smul.addr %s323, 8
          %s325 = scalar_lea.hbm %s3, %s324
          %s326 = sshll.u32 %s315, 4
          %s327 = int_to_ptr.vmem [resolvable:$true] %s326
          %s328 = sshll.u32 %s325, 4
          %s329 = int_to_ptr.hbm [resolvable:$true] %s328
          %334 = dma.vmem_to_hbm [thread:$0]  %s327, 256, %s329, %s312, 128, 384, 8
        $region48: #{tpu_custom_call.1} parent=31 // pred_fallthru
          _
      $region32: #{tpu_custom_call.1} parent=5 // pred_fallthru
        _
      %p335 = scmp.le.s32.totalorder 2, %s16
      // Predicated region
      $region49: #{tpu_custom_call.1} parent=5 // pred_check
        %p336 = pneg %p335
      $region50: #{tpu_custom_call.1} parent=5 // pred_check_branch
        %338 = sbr.rel (%p336) target = $region52
      $region51: #{tpu_custom_call.1} parent=5 // pred_region
        %s339 = ssub.s32 %s16, 2
        // Predicated region
        $region53: #{tpu_custom_call.1} parent=51 // pred_check
          %p340 = pneg %p137
        $region54: #{tpu_custom_call.1} parent=51 // pred_check_branch
          %342 = sbr.rel (%p340) target = $region56
        $region55: #{tpu_custom_call.1} parent=51 // pred_region
          %s343 = sand.u32 %s122, 1
          %s344 = scalar_lea.sflag [#allocation4], %s343
          %s345 = sand.u32 %s122, 1
          %s346 = smul.addr %s345, 16
          %s347 = scalar_lea.vmem [#allocation8], %s346
          %349 = dma.done %s344, 256
        $region56: #{tpu_custom_call.1} parent=51 // pred_fallthru
          _
      $region52: #{tpu_custom_call.1} parent=5 // pred_fallthru
        _
    $region6: #{tpu_custom_call.1} parent=1 // loop_footer
      %s20 = sadd.s32 1, %s16
    $region7: #{tpu_custom_call.1} parent=1 // loop_footer_branch
      %15 = sbr.rel target = $region3
    $region8: #{tpu_custom_call.1} parent=1 // loop_exit
      _
    %350 = vsyncpa [#allocation3], 1
    %s351 = scalar_lea.sflag [#allocation3], 1
    %352 = vsyncpa %s351, 1
    %353 = vsyncpa [#allocation6], 1
    %s354 = scalar_lea.sflag [#allocation6], 1
    %355 = vsyncpa %s354, 1
    %356 = vsyncpa [#allocation4], 1
    %s357 = scalar_lea.sflag [#allocation4], 1
    %358 = vsyncpa %s357, 1

</llo_original>
